<compile_context>
chip_gen: v6e
topology: v6e:2x2x1
jax: 0.10.0
libtpu: 0.0.40
codegen_flags: <defaults>
</compile_context>

<pallas_src>
import math
from functools import partial

import jax
import jax.numpy as jnp
import numpy as np
from jax.experimental import pallas as pl
from jax.experimental.pallas import tpu as pltpu


def _cdiv(a, b):
    return -(-a // b)


def _round_up(a, m):
    return _cdiv(a, m) * m


def _precompute_dct_matrix(length: int, dtype=jnp.float32) -> jnp.ndarray:
    """Port of DiscreteCosineTransform._precompute (computed in float64)."""
    L = length
    k = np.arange(L, dtype=np.float64)
    n = math.pi / L * (k + 0.5)
    z = np.sqrt(np.clip(k + 1, 1.0, 2.0) / L)
    # W[n_idx, k_idx] = z[k_idx] * cos(k[k_idx] * n[n_idx])
    W = z[None, :] * np.cos(k[None, :] * n[:, None])
    return jnp.asarray(W, dtype=dtype)


def _chip_info():
    """(vmem_budget_bytes, vmem_limit_cap_bytes, fold_width_lanes, num_tensorcores)."""
    kind = ""
    try:
        kind = jax.devices()[0].device_kind.lower()
    except Exception:
        pass
    vmem_cap = None
    try:
        vmem_cap = int(pltpu.get_tpu_info().vmem_capacity_bytes)
    except Exception:
        pass

    is_v7 = "v7" in kind
    is_v5e = ("v5e" in kind) or ("v5 lite" in kind) or ("v5litepod" in kind)

    if vmem_cap is None:
        vmem_cap = (64 << 20) if is_v7 else (128 << 20)

    if is_v7:
        budget, limit_cap, fold_width, num_tc = 24 << 20, 48 << 20, 256, 2
    elif is_v5e:
        budget, limit_cap, fold_width, num_tc = 40 << 20, 64 << 20, 128, 1
    else:  # v6e and other single-TC chips
        budget, limit_cap, fold_width, num_tc = 40 << 20, 64 << 20, 256, 1

    limit_cap = min(limit_cap, int(vmem_cap * 3 // 4))
    budget = max(8 << 20, min(budget, limit_cap - (8 << 20)))
    return budget, limit_cap, fold_width, num_tc


def _dct_kernel(x_ref, w_ref, o_ref):
    # Cast to the weight dtype inside the kernel (free VPU filler; avoids a
    # wrapper-side astype HBM pass).  Accumulate in f32 on the MXU.
    x = x_ref[...].astype(w_ref.dtype)
    o_ref[...] = jnp.dot(
        x, w_ref[...], preferred_element_type=jnp.float32
    ).astype(o_ref.dtype)


def dct(x, Wk, *, fold, tile_m, vmem_budget, vmem_limit_cap, num_tc):
    """Apply DCT along the last axis of x (shape (..., L)) via a Pallas matmul.

    Wk is either the (L, L) DCT matrix (fold == 1) or its block-diagonal
    kron(eye(G), W) of shape (G*L, G*L) for the lane-dense folded path.
    """
    G = fold
    K, N = Wk.shape
    L = K // G
    if x.shape[-1] != L:
        raise ValueError("dimension of input must equal dct_length")

    orig_shape = x.shape
    out_dtype = jnp.result_type(x.dtype, Wk.dtype)
    x_isz = jnp.dtype(x.dtype).itemsize
    w_isz = jnp.dtype(Wk.dtype).itemsize
    o_isz = jnp.dtype(out_dtype).itemsize

    M = int(np.prod(orig_shape[:-1])) if x.ndim > 1 else 1
    x2d = x.reshape(M, L)

    # ---- Lane-dense fold (pad only to a multiple of G, and only if needed) ----
    rows = M
    if G > 1:
        rem = M % G
        if rem:
            rows = M + (G - rem)
            x2d = jnp.pad(x2d, ((0, rows - M), (0, 0)))
        xf = x2d.reshape(rows // G, K)
    else:
        xf = x2d
    Mf = rows // G

    # ---- Tile selection -------------------------------------------------------
    tm = min(tile_m, _round_up(Mf, 8))
    if num_tc > 1 and Mf > 8:
        # Only on multi-TC chips (v7x) is it worth forcing >= num_tc row steps.
        tm = min(tm, _round_up(_cdiv(Mf, num_tc), 8))
    tm = max(8, tm)
    tn = N if N <= 1024 else 512  # ragged last N tile handled by Pallas masking

    def _fp(tm_, tn_):
        # double-buffered x, W and out tiles
        return 2 * tm_ * K * x_isz + 2 * K * tn_ * w_isz + 2 * tm_ * tn_ * o_isz

    while _fp(tm, tn) > vmem_budget:
        if tm > 128:
            tm = max(128, _round_up(tm // 2, 8))
        elif tn > 128:
            tn = max(128, _round_up(_cdiv(tn, 2), 128))
        else:
            # TODO(synk): tile the K axis with an f32 VMEM accumulator (P3) for
            # very large L instead of relying on minimum 128x128 tiles.
            break

    row_tiles = _cdiv(Mf, tm)
    n_tiles = _cdiv(N, tn)

    # vmem_limit sized to ~2x the real footprint (keeps v5e scoped VMEM friendly),
    # capped chip-aware (48 MiB on v7x's 64 MiB VMEM).
    vmem_limit = int(min(max(2 * _fp(tm, tn), 8 << 20), vmem_limit_cap))

    # ---- Grid order: keep the operand that would be re-swept resident ---------
    refetch_w = row_tiles * K * N * w_isz  # i-outer: full W re-fetched per row tile
    refetch_x = n_tiles * Mf * K * x_isz   # j-outer: full x re-fetched per N tile
    if n_tiles == 1 or refetch_w <= refetch_x:
        grid = (row_tiles, n_tiles)
        x_map = lambda i, j: (i, 0)
        w_map = lambda i, j: (0, j)
        o_map = lambda i, j: (i, j)
    else:
        grid = (n_tiles, row_tiles)
        x_map = lambda j, i: (i, 0)
        w_map = lambda j, i: (0, j)
        o_map = lambda j, i: (i, j)

    out = pl.pallas_call(
        _dct_kernel,
        out_shape=jax.ShapeDtypeStruct((Mf, N), out_dtype),
        grid_spec=pltpu.PrefetchScalarGridSpec(
            num_scalar_prefetch=0,
            grid=grid,
            in_specs=[
                pl.BlockSpec((tm, K), x_map),   # folded row tile
                pl.BlockSpec((K, tn), w_map),   # (block-diagonal) DCT matrix tile
            ],
            out_specs=pl.BlockSpec((tm, tn), o_map),
        ),
        compiler_params=pltpu.CompilerParams(
            dimension_semantics=("parallel", "parallel"),
            vmem_limit_bytes=vmem_limit,
        ),
    )(xf, Wk)

    out = out.reshape(rows, L)
    if rows != M:
        out = out[:M]
    return out.reshape(orig_shape)


class DiscreteCosineTransformPallas:
    """JAX/Pallas counterpart of diffsptk.DiscreteCosineTransform."""

    def __init__(self, dct_length: int, dtype=jnp.float32, tile_m: int = 512):
        assert 1 <= dct_length
        self.dct_length = dct_length
        # dtype=jnp.bfloat16 halves x/W bytes moved (accumulation stays f32);
        # keep f32 default for accuracy parity with the PyTorch module.
        self.W = _precompute_dct_matrix(dct_length, dtype=dtype)

        budget, limit_cap, fold_width, num_tc = _chip_info()
        L = dct_length
        if L < fold_width and fold_width % L == 0:
            G = fold_width // L
            # Block-diagonal weight: each folded row holds G independent L-chunks.
            Wk = jnp.kron(jnp.eye(G, dtype=self.W.dtype), self.W)
        else:
            G = 1
            Wk = self.W
        self.G = G
        self.Wk = Wk

        self._fn = jax.jit(
            partial(
                dct,
                fold=G,
                tile_m=tile_m,
                vmem_budget=budget,
                vmem_limit_cap=limit_cap,
                num_tc=num_tc,
            )
        )

    def __call__(self, x: jnp.ndarray) -> jnp.ndarray:
        return self._fn(x, self.Wk)


if __name__ == "__main__":
    key = jax.random.PRNGKey(0)

    # Main check: batch=2, channels=4, seq=16, dct_length L=32 -> x: (2, 4, 16, 32)
    L = 32
    x = jax.random.normal(key, (2, 4, 16, L), dtype=jnp.float32)
    module = DiscreteCosineTransformPallas(L)
    y = jax.block_until_ready(module(x))
    y_ref = jnp.matmul(x, module.W)
    assert y.shape == x.shape
    assert jnp.allclose(y, y_ref, atol=1e-5, rtol=1e-5), "mismatch vs reference (L=32)"

    # L = 128, odd row count (exercises fold padding / ragged row tile).
    L2 = 128
    x2 = jax.random.normal(jax.random.PRNGKey(1), (3, 5, L2), dtype=jnp.float32)
    mod2 = DiscreteCosineTransformPallas(L2)
    y2 = jax.block_until_ready(mod2(x2))
    y2_ref = jnp.matmul(x2, mod2.W)
    assert jnp.allclose(y2, y2_ref, atol=1e-4, rtol=1e-4), "mismatch vs reference (L=128)"

    # Un-folded path (L >= 256), non-multiple-of-tile row count.
    L3 = 256
    x3 = jax.random.normal(jax.random.PRNGKey(2), (7, L3), dtype=jnp.float32)
    mod3 = DiscreteCosineTransformPallas(L3)
    y3 = jax.block_until_ready(mod3(x3))
    y3_ref = jnp.matmul(x3, mod3.W)
    assert jnp.allclose(y3, y3_ref, atol=1e-4, rtol=1e-4), "mismatch vs reference (L=256)"

    # Docstring example: dct(ramp(3)) with DCT(4).
    ramp = jnp.arange(4, dtype=jnp.float32)
    mod4 = DiscreteCosineTransformPallas(4)
    y4 = jax.block_until_ready(mod4(ramp))
    expected = jnp.array([3.0000, -2.2304, 0.0000, -0.1585], dtype=jnp.float32)
    assert jnp.allclose(y4, expected, atol=1e-3), "mismatch vs diffsptk docstring values"

    print("KERNEL_OK")
</pallas_src>

<mosaic_0001>
module attributes {stable_mosaic.version = 11 : i64} {
  func.func @_dct_kernel(%arg0: i32, %arg1: i32, %arg2: memref<16x256xf32, #tpu.memory_space<vmem>>, %arg3: memref<256x256xf32, #tpu.memory_space<vmem>>, %arg4: memref<16x256xf32, #tpu.memory_space<vmem>>) attributes {dimension_semantics = [#tpu.dimension_semantics<parallel>, #tpu.dimension_semantics<parallel>], iteration_bounds = array<i64: 1, 1>, scalar_prefetch = 0 : i64, scratch_operands = 0 : i64, tpu.core_type = #tpu.core_type<tc>, window_params = [{transform_indices = @transform_0, window_bounds = array<i64: 16, 256>}, {transform_indices = @transform_1, window_bounds = array<i64: 256, 256>}, {transform_indices = @transform_2, window_bounds = array<i64: 16, 256>}]} {
    %c0 = arith.constant 0 : index
    %c0_0 = arith.constant 0 : index
    %0 = vector.load %arg2[%c0, %c0_0] : memref<16x256xf32, #tpu.memory_space<vmem>>, vector<16x256xf32>
    %c0_1 = arith.constant 0 : index
    %c0_2 = arith.constant 0 : index
    %1 = vector.load %arg3[%c0_1, %c0_2] : memref<256x256xf32, #tpu.memory_space<vmem>>, vector<256x256xf32>
    %cst = arith.constant dense<0.000000e+00> : vector<16x256xf32>
    %2 = tpu.matmul %0, %1, %cst {dimension_numbers = #tpu.dot_dimension_numbers<[1], [0], [0], [1], [0, 0, 1, 1], [], []>} : vector<16x256xf32>, vector<256x256xf32>, vector<16x256xf32> -> vector<16x256xf32>
    %c0_3 = arith.constant 0 : index
    %c0_4 = arith.constant 0 : index
    %3 = vector.load %arg4[%c0_3, %c0_4] : memref<16x256xf32, #tpu.memory_space<vmem>>, vector<16x256xf32>
    tpu.vector_store %arg4[%c0_3, %c0_4], %2 {strides = array<i32>} : memref<16x256xf32, #tpu.memory_space<vmem>>, vector<16x256xf32>,
    return
  }
  func.func @transform_0(%arg0: i32, %arg1: i32) -> (i32, i32) {
    %c0_i32 = arith.constant 0 : i32
    %c0_i32_0 = arith.constant 0 : i32
    return %arg0, %c0_i32 : i32, i32
  }
  func.func @transform_1(%arg0: i32, %arg1: i32) -> (i32, i32) {
    %c0_i32 = arith.constant 0 : i32
    %c0_i32_0 = arith.constant 0 : i32
    return %c0_i32, %arg1 : i32, i32
  }
  func.func @transform_2(%arg0: i32, %arg1: i32) -> (i32, i32) {
    %c0_i32 = arith.constant 0 : i32
    return %arg0, %arg1 : i32, i32
  }
}

</mosaic_0001>

<llo_original>
// kernel: dct.1
$region0: #{dct.1}
  #allocation0 [shape = 'u32[]', space=smem, size = 0x4, offset = 0x4, fixed_abs, tag = 'smem constant byte address 0x4 - core index']
  #allocation1 [shape = 'u32[144,128]{1,0:T(1,128)}', space=vmem, size = 0x12000, scoped, tag = 'internal scratch']
  %s0 = inlined_call_operand.vmem [shape: f32[16,256], index: 0, kind: input, shape index: {}]
  %s1 = inlined_call_operand.hbm [shape: f32[256,256], index: 1, kind: input, shape index: {}]
  %s2 = inlined_call_operand.vmem [shape: f32[16,256], index: 2, kind: output, shape index: {}]
  %s3 = sld [smem:[#allocation0]]
  $region22: #{dct.1} parent=0
    _
  %s5 = ssub.s32 1, %s3
  %s6 = scalar_select 0, %s5, %s3
  $region1: #{dct.1} parent=0
    #allocation2 [shape = 'u8[262144]{0}', space=vmem, size = 0x40000, scoped, tag = 'input window, operand 1, single buffered']
    #allocation3 [shape = 's32[1]{0}', space=sflag, size = 0x4, scoped, tag = 'scoped memory for dct.1']
    %7 = vsyncpa [#allocation3], 0
    // Predicated region
    $region2: #{dct.1} parent=1 // pred_check
      _
    $region3: #{dct.1} parent=1 // pred_check_branch
      %9 = sbr.rel (0) target = $region5
    $region4: #{dct.1} parent=1 // pred_region
      _
    $region5: #{dct.1} parent=1 // pred_fallthru
      _
    // Predicated region
    $region6: #{dct.1} parent=1 // pred_check
      _
    $region7: #{dct.1} parent=1 // pred_check_branch
      %11 = sbr.rel (0) target = $region9
    $region8: #{dct.1} parent=1 // pred_region
      %s13 = ssub.s32 8192, 8192
      %14 = vsyncadd [#allocation3], %s13
      %s15 = sshll.u32 [#allocation2], 4
      %s16 = int_to_ptr.vmem [resolvable:$true] %s15
      %21 = dma.hbm_to_vmem [thread:$0]  %s1, 8192, %s16, [#allocation3], 256, 256, 16
    $region9: #{dct.1} parent=1 // pred_fallthru
      _
    // Predicated region
    $region10: #{dct.1} parent=1 // pred_check
      _
    $region11: #{dct.1} parent=1 // pred_check_branch
      %23 = sbr.rel (0) target = $region13
    $region12: #{dct.1} parent=1 // pred_region
      %24 = dma.done [#allocation3], 8192
    $region13: #{dct.1} parent=1 // pred_fallthru
      _
    %v25 = vld [vmem:[%s0] sm:$0xff]
    %v26 = vld [vmem:[%s0 + $0x8] sm:$0xff]
    %v27 = vld [vmem:[%s0 + $0x10] sm:$0xff]
    %v28 = vld [vmem:[%s0 + $0x18] sm:$0xff]
    %v29 = vld [vmem:[#allocation2] sm:$0xff]
    %v30 = vld [vmem:[#allocation2 + $0x8] sm:$0xff]
    %v31 = vld [vmem:[#allocation2 + $0x10] sm:$0xff]
    %v32 = vld [vmem:[#allocation2 + $0x18] sm:$0xff]
    %v33 = vld [vmem:[#allocation2 + $0x20] sm:$0xff]
    %v34 = vld [vmem:[#allocation2 + $0x28] sm:$0xff]
    %v35 = vld [vmem:[#allocation2 + $0x30] sm:$0xff]
    %v36 = vld [vmem:[#allocation2 + $0x38] sm:$0xff]
    %v37 = vld [vmem:[#allocation2 + $0x40] sm:$0xff]
    %v38 = vld [vmem:[#allocation2 + $0x48] sm:$0xff]
    %v39 = vld [vmem:[#allocation2 + $0x50] sm:$0xff]
    %v40 = vld [vmem:[#allocation2 + $0x58] sm:$0xff]
    %v41 = vld [vmem:[#allocation2 + $0x60] sm:$0xff]
    %v42 = vld [vmem:[#allocation2 + $0x68] sm:$0xff]
    %v43 = vld [vmem:[#allocation2 + $0x70] sm:$0xff]
    %v44 = vld [vmem:[#allocation2 + $0x78] sm:$0xff]
    %v45 = vld [vmem:[#allocation2 + $0x80] sm:$0xff]
    %v46 = vld [vmem:[#allocation2 + $0x88] sm:$0xff]
    %v47 = vld [vmem:[#allocation2 + $0x90] sm:$0xff]
    %v48 = vld [vmem:[#allocation2 + $0x98] sm:$0xff]
    %v49 = vld [vmem:[#allocation2 + $0xa0] sm:$0xff]
    %v50 = vld [vmem:[#allocation2 + $0xa8] sm:$0xff]
    %v51 = vld [vmem:[#allocation2 + $0xb0] sm:$0xff]
    %v52 = vld [vmem:[#allocation2 + $0xb8] sm:$0xff]
    %v53 = vld [vmem:[#allocation2 + $0xc0] sm:$0xff]
    %v54 = vld [vmem:[#allocation2 + $0xc8] sm:$0xff]
    %v55 = vld [vmem:[#allocation2 + $0xd0] sm:$0xff]
    %v56 = vld [vmem:[#allocation2 + $0xd8] sm:$0xff]
    %v57 = vld [vmem:[#allocation2 + $0xe0] sm:$0xff]
    %v58 = vld [vmem:[#allocation2 + $0xe8] sm:$0xff]
    %v59 = vld [vmem:[#allocation2 + $0xf0] sm:$0xff]
    %v60 = vld [vmem:[#allocation2 + $0xf8] sm:$0xff]
    %v61 = vld [vmem:[#allocation2 + $0x100] sm:$0xff]
    %v62 = vld [vmem:[#allocation2 + $0x108] sm:$0xff]
    %v63 = vld [vmem:[#allocation2 + $0x110] sm:$0xff]
    %v64 = vld [vmem:[#allocation2 + $0x118] sm:$0xff]
    %v65 = vld [vmem:[#allocation2 + $0x120] sm:$0xff]
    %v66 = vld [vmem:[#allocation2 + $0x128] sm:$0xff]
    %v67 = vld [vmem:[#allocation2 + $0x130] sm:$0xff]
    %v68 = vld [vmem:[#allocation2 + $0x138] sm:$0xff]
    %v69 = vld [vmem:[#allocation2 + $0x140] sm:$0xff]
    %v70 = vld [vmem:[#allocation2 + $0x148] sm:$0xff]
    %v71 = vld [vmem:[#allocation2 + $0x150] sm:$0xff]
    %v72 = vld [vmem:[#allocation2 + $0x158] sm:$0xff]
    %v73 = vld [vmem:[#allocation2 + $0x160] sm:$0xff]
    %v74 = vld [vmem:[#allocation2 + $0x168] sm:$0xff]
    %v75 = vld [vmem:[#allocation2 + $0x170] sm:$0xff]
    %v76 = vld [vmem:[#allocation2 + $0x178] sm:$0xff]
    %v77 = vld [vmem:[#allocation2 + $0x180] sm:$0xff]
    %v78 = vld [vmem:[#allocation2 + $0x188] sm:$0xff]
    %v79 = vld [vmem:[#allocation2 + $0x190] sm:$0xff]
    %v80 = vld [vmem:[#allocation2 + $0x198] sm:$0xff]
    %v81 = vld [vmem:[#allocation2 + $0x1a0] sm:$0xff]
    %v82 = vld [vmem:[#allocation2 + $0x1a8] sm:$0xff]
    %v83 = vld [vmem:[#allocation2 + $0x1b0] sm:$0xff]
    %v84 = vld [vmem:[#allocation2 + $0x1b8] sm:$0xff]
    %v85 = vld [vmem:[#allocation2 + $0x1c0] sm:$0xff]
    %v86 = vld [vmem:[#allocation2 + $0x1c8] sm:$0xff]
    %v87 = vld [vmem:[#allocation2 + $0x1d0] sm:$0xff]
    %v88 = vld [vmem:[#allocation2 + $0x1d8] sm:$0xff]
    %v89 = vld [vmem:[#allocation2 + $0x1e0] sm:$0xff]
    %v90 = vld [vmem:[#allocation2 + $0x1e8] sm:$0xff]
    %v91 = vld [vmem:[#allocation2 + $0x1f0] sm:$0xff]
    %v92 = vld [vmem:[#allocation2 + $0x1f8] sm:$0xff]
    %93 = vmatprep.subr.mxu0 %v60
    %94 = vmatpush1.msra.mxu0 %v59
    %95 = vmatprep.subr.mxu0 %v58
    %96 = vmatpush1.msra.mxu0 %v57
    %97 = vmatprep.subr.mxu0 %v56
    %98 = vmatpush1.msra.mxu0 %v55
    %99 = vmatprep.subr.mxu0 %v54
    %100 = vmatpush1.msra.mxu0 %v53
    %101 = vmatprep.subr.mxu0 %v52
    %102 = vmatpush1.msra.mxu0 %v51
    %103 = vmatprep.subr.mxu0 %v50
    %104 = vmatpush1.msra.mxu0 %v49
    %105 = vmatprep.subr.mxu0 %v48
    %106 = vmatpush1.msra.mxu0 %v47
    %107 = vmatprep.subr.mxu0 %v46
    %108 = vmatpush1.msra.mxu0 %v45
    %109 = vmatprep.subr.mxu0 %v44
    %110 = vmatpush1.msra.mxu0 %v43
    %111 = vmatprep.subr.mxu0 %v42
    %112 = vmatpush1.msra.mxu0 %v41
    %113 = vmatprep.subr.mxu0 %v40
    %114 = vmatpush1.msra.mxu0 %v39
    %115 = vmatprep.subr.mxu0 %v38
    %116 = vmatpush1.msra.mxu0 %v37
    %117 = vmatprep.subr.mxu0 %v36
    %118 = vmatpush1.msra.mxu0 %v35
    %119 = vmatprep.subr.mxu0 %v34
    %120 = vmatpush1.msra.mxu0 %v33
    %121 = vmatprep.subr.mxu0 %v32
    %122 = vmatpush1.msra.mxu0 %v31
    %123 = vmatprep.subr.mxu0 %v30
    %124 = vmatpush1.msra.mxu0 %v29
    %125 = vmatprep.subr.mxu0 %v92
    %126 = vmatpush2.msra.mxu0 %v91
    %127 = vmatprep.subr.mxu0 %v90
    %128 = vmatpush2.msra.mxu0 %v89
    %129 = vmatprep.subr.mxu0 %v88
    %130 = vmatpush2.msra.mxu0 %v87
    %131 = vmatprep.subr.mxu0 %v86
    %132 = vmatpush2.msra.mxu0 %v85
    %133 = vmatprep.subr.mxu0 %v84
    %134 = vmatpush2.msra.mxu0 %v83
    %135 = vmatprep.subr.mxu0 %v82
    %136 = vmatpush2.msra.mxu0 %v81
    %137 = vmatprep.subr.mxu0 %v80
    %138 = vmatpush2.msra.mxu0 %v79
    %139 = vmatprep.subr.mxu0 %v78
    %140 = vmatpush2.msra.mxu0 %v77
    %141 = vmatprep.subr.mxu0 %v76
    %142 = vmatpush2.msra.mxu0 %v75
    %143 = vmatprep.subr.mxu0 %v74
    %144 = vmatpush2.msra.mxu0 %v73
    %145 = vmatprep.subr.mxu0 %v72
    %146 = vmatpush2.msra.mxu0 %v71
    %147 = vmatprep.subr.mxu0 %v70
    %148 = vmatpush2.msra.mxu0 %v69
    %149 = vmatprep.subr.mxu0 %v68
    %150 = vmatpush2.msra.mxu0 %v67
    %151 = vmatprep.subr.mxu0 %v66
    %152 = vmatpush2.msra.mxu0 %v65
    %153 = vmatprep.subr.mxu0 %v64
    %154 = vmatpush2.msra.mxu0 %v63
    %155 = vmatprep.subr.mxu0 %v62
    %156 = vmatpush2.msra.mxu0 %v61
    %157 = vmatprep.mubr.f32.mxu0 %v26
    %158 = vmatmul.mubr.f32.gmra.mxu0 %v25
    %v159 = vpop.f32.mrf.mxu0
    %v160 = vadd.f32 0.0, %v159
    %v161 = vpop.f32.mrf.mxu0
    %v162 = vadd.f32 0.0, %v161
    %163 = vmatprep.mubr.f32.mxu0 %v28
    %164 = vmatmul.mubr.f32.gmra.mxu0 %v27
    %v165 = vpop.f32.mrf.mxu0
    %v166 = vadd.f32 0.0, %v165
    %v167 = vpop.f32.mrf.mxu0
    %v168 = vadd.f32 0.0, %v167
    %169 = vdwg.mxu0
    %170 = vst [vmem:[%s2] sm:$0xff] %v160
    %171 = vst [vmem:[%s2 + $0x8] sm:$0xff] %v162
    %172 = vst [vmem:[%s2 + $0x10] sm:$0xff] %v166
    %173 = vst [vmem:[%s2 + $0x18] sm:$0xff] %v168
    // Predicated region
    $region14: #{dct.1} parent=1 // pred_check
      _
    $region15: #{dct.1} parent=1 // pred_check_branch
      %175 = sbr.rel (0) target = $region17
    $region16: #{dct.1} parent=1 // pred_region
      _
    $region17: #{dct.1} parent=1 // pred_fallthru
      _
    // Predicated region
    $region18: #{dct.1} parent=1 // pred_check
      _
    $region19: #{dct.1} parent=1 // pred_check_branch
      %177 = sbr.rel (0) target = $region21
    $region20: #{dct.1} parent=1 // pred_region
      _
    $region21: #{dct.1} parent=1 // pred_fallthru
      _
    %178 = vsyncpa [#allocation3], 1

</llo_original>
